<compile_context>
chip_gen: v6e
topology: v6e:2x2x1
jax: 0.10.0
libtpu: 0.0.40
codegen_flags: <defaults>
</compile_context>

<pallas_src>
import functools

import jax
import jax.numpy as jnp
from jax.experimental import pallas as pl
from jax.experimental.pallas import tpu as pltpu

# ----------------------------- config --------------------------------------
N_BINS = 256        # config['n_bins']
NOTES_NUMBER = 128  # config['notes_number']
BN_EPS = 1e-5
MAX_TB = 2048       # batch tile cap (few-MiB VMEM footprint, fine on v5e-v7x)
ROW_ALIGN = 8       # f32 sublane packing (x streams in f32)


def _cdiv(a, b):
    return (a + b - 1) // b


def _round_up(x, m):
    return ((x + m - 1) // m) * m


# ----------------------------- kernel --------------------------------------
def dnn3_kernel(x_ref,
                w1_ref, b1_ref,
                w2_ref, b2_ref,
                w3_ref, b3_ref,
                o_ref):
    """Fused forward for one batch tile.

    dense1 -> relu -> (bn1 folded into w2/b2) -> (dropout1 = id) ->
    dense2 -> relu -> (bn2 folded into w3/b3) -> (dropout2 = id) ->
    dense3 -> relu
    """
    cd = w1_ref.dtype  # compute (MXU operand) dtype, e.g. bfloat16

    # layer 1 (x cast f32 -> bf16 in-kernel; f32 accumulation on the MXU)
    x = x_ref[...].astype(cd)
    h = jnp.dot(x, w1_ref[...],
                preferred_element_type=jnp.float32) + b1_ref[...]
    h = jnp.maximum(h, 0.0).astype(cd)

    # layer 2 (BN1 already folded into w2/b2)
    h = jnp.dot(h, w2_ref[...],
                preferred_element_type=jnp.float32) + b2_ref[...]
    h = jnp.maximum(h, 0.0).astype(cd)

    # layer 3 (BN2 already folded into w3/b3)
    h = jnp.dot(h, w3_ref[...],
                preferred_element_type=jnp.float32) + b3_ref[...]
    o_ref[...] = jnp.maximum(h, 0.0).astype(o_ref.dtype)


# --------------------- BN folding (host-side, load time) --------------------
def fold_params(params, compute_dtype=jnp.bfloat16):
    """Fold BN1 into (w2, b2) and BN2 into (w3, b3); cast weights to bf16.

    Run ONCE at model-load time; the folded tuple is what dnn3_forward takes.
    """
    (w1, b1, s1, t1, w2, b2, s2, t2, w3, b3) = params
    w2f = w2 * s1.reshape(-1, 1)          # scale rows of w2 by s1
    b2f = b2 + t1 @ w2                    # shift folded into bias
    w3f = w3 * s2.reshape(-1, 1)
    b3f = b3 + t2 @ w3
    return (w1.astype(compute_dtype), b1.astype(jnp.float32),
            w2f.astype(compute_dtype), b2f.astype(jnp.float32),
            w3f.astype(compute_dtype), b3f.astype(jnp.float32))


# ----------------------------- wrapper --------------------------------------
@functools.partial(jax.jit, static_argnames=("max_tb",))
def dnn3_forward(x, folded, *, max_tb=MAX_TB):
    """x: (B, N_BINS) float32, folded = fold_params(...).  -> (B, NOTES_NUMBER) f32."""
    B, nbins = x.shape
    assert nbins == N_BINS
    w1, b1, w2, b2, w3, b3 = folded

    # ---- batch tiling (static at trace time) -------------------------------
    if B <= ROW_ALIGN:
        tb = B                      # block equals full array dim -> always legal
        n_steps = 1
    else:
        # At least 2 grid steps for big batches so both v7x TensorCores get
        # work under "parallel" semantics; otherwise as few/large as possible.
        min_steps = 2 if B >= 256 else 1
        n_steps = max(_cdiv(B, max_tb), min_steps)
        tb = _round_up(_cdiv(B, n_steps), ROW_ALIGN)
        n_steps = _cdiv(B, tb)
    # No jnp.pad / out[:B]: Pallas masks the partial last block itself.

    # Weights/biases are resident: constant index_map -> no re-DMA per step.
    def resident(shape):
        return pl.BlockSpec(shape, lambda i: (0, 0))

    out = pl.pallas_call(
        dnn3_kernel,
        out_shape=jax.ShapeDtypeStruct((B, NOTES_NUMBER), jnp.float32),
        grid_spec=pltpu.PrefetchScalarGridSpec(
            num_scalar_prefetch=0,
            grid=(n_steps,),
            in_specs=[
                pl.BlockSpec((tb, N_BINS), lambda i: (i, 0)),          # x tile
                resident((N_BINS, N_BINS)), resident((1, N_BINS)),     # w1, b1
                resident((N_BINS, N_BINS)), resident((1, N_BINS)),     # w2', b2'
                resident((N_BINS, NOTES_NUMBER)),                      # w3'
                resident((1, NOTES_NUMBER)),                           # b3'
            ],
            out_specs=pl.BlockSpec((tb, NOTES_NUMBER), lambda i: (i, 0)),
        ),
        compiler_params=pltpu.CompilerParams(
            dimension_semantics=("parallel",)),
    )(x, w1, b1, w2, b2, w3, b3)

    return out


# --------------------------- param construction -----------------------------
def make_params(key):
    """Deterministic synthetic parameters matching Dnn3Layers shapes."""
    ks = jax.random.split(key, 10)

    def linear(kw, kb, fan_in, fan_out):
        # PyTorch Linear stores W as (out, in); we store W.T = (in, out).
        bound = 1.0 / jnp.sqrt(fan_in)
        w = jax.random.uniform(kw, (fan_in, fan_out), jnp.float32, -bound, bound)
        b = jax.random.uniform(kb, (1, fan_out), jnp.float32, -bound, bound)
        return w, b

    w1, b1 = linear(ks[0], ks[1], N_BINS, N_BINS)
    w2, b2 = linear(ks[2], ks[3], N_BINS, N_BINS)
    w3, b3 = linear(ks[4], ks[5], N_BINS, NOTES_NUMBER)

    def bn(kg, kb, n):
        gamma = 1.0 + 0.1 * jax.random.normal(kg, (1, n), jnp.float32)
        beta = 0.1 * jax.random.normal(kb, (1, n), jnp.float32)
        running_mean = jnp.zeros((1, n), jnp.float32)   # fresh BN running stats
        running_var = jnp.ones((1, n), jnp.float32)
        scale = gamma / jnp.sqrt(running_var + BN_EPS)  # fold into scale/shift
        shift = beta - running_mean * scale
        return scale, shift

    s1, t1 = bn(ks[6], ks[7], N_BINS)
    s2, t2 = bn(ks[8], ks[9], N_BINS)

    return (w1, b1, s1, t1, w2, b2, s2, t2, w3, b3)


# ------------------------- pure-JAX references -------------------------------
def dnn3_reference_folded(x, folded, compute_dtype=jnp.bfloat16):
    """Mirrors the kernel's math exactly (folded BN, bf16 operands, f32 acc)."""
    w1, b1, w2, b2, w3, b3 = folded
    h = jnp.maximum(jnp.dot(x.astype(compute_dtype), w1,
                            preferred_element_type=jnp.float32) + b1, 0.0)
    h = jnp.maximum(jnp.dot(h.astype(compute_dtype), w2,
                            preferred_element_type=jnp.float32) + b2, 0.0)
    h = jnp.maximum(jnp.dot(h.astype(compute_dtype), w3,
                            preferred_element_type=jnp.float32) + b3, 0.0)
    return h


def dnn3_reference_f32(x, params):
    """Original (unfolded, full f32) reference: Linear->ReLU->BN per layer."""
    (w1, b1, s1, t1, w2, b2, s2, t2, w3, b3) = params
    h = jnp.maximum(x @ w1 + b1, 0.0) * s1 + t1
    h = jnp.maximum(h @ w2 + b2, 0.0) * s2 + t2
    return jnp.maximum(h @ w3 + b3, 0.0)


# ------------------------------- main ----------------------------------------
if __name__ == "__main__":
    key = jax.random.PRNGKey(0)
    kx, kp = jax.random.split(key)

    B = 16
    x = jax.random.normal(kx, (B, N_BINS), jnp.float32)
    params = make_params(kp)

    # Fold BN / cast weights ONCE at load time (hoisted out of the jitted fwd).
    folded = fold_params(params)
    folded = jax.tree_util.tree_map(jax.block_until_ready, folded)

    out = dnn3_forward(x, folded)
    out = jax.block_until_ready(out)
    assert out.shape == (B, NOTES_NUMBER)
    assert out.dtype == jnp.float32

    # Exact-math mirror of the kernel (folded BN, bf16 matmul operands).
    ref_folded = dnn3_reference_folded(x, folded)
    assert jnp.allclose(out, ref_folded, atol=2e-3, rtol=2e-3)

    # Semantic check vs. the unfolded full-f32 Dnn3Layers forward
    # (difference is only bf16 operand rounding).
    ref_f32 = dnn3_reference_f32(x, params)
    assert jnp.allclose(out, ref_f32, atol=1e-1, rtol=1e-1)

    print("KERNEL_OK")
</pallas_src>

<mosaic_0001>
module attributes {stable_mosaic.version = 11 : i64} {
  func.func @dnn3_kernel(%arg0: i32, %arg1: memref<16x256xf32, #tpu.memory_space<vmem>>, %arg2: memref<256x256xbf16, #tpu.memory_space<vmem>>, %arg3: memref<1x256xf32, #tpu.memory_space<vmem>>, %arg4: memref<256x256xbf16, #tpu.memory_space<vmem>>, %arg5: memref<1x256xf32, #tpu.memory_space<vmem>>, %arg6: memref<256x128xbf16, #tpu.memory_space<vmem>>, %arg7: memref<1x128xf32, #tpu.memory_space<vmem>>, %arg8: memref<16x128xf32, #tpu.memory_space<vmem>>) attributes {dimension_semantics = [#tpu.dimension_semantics<parallel>], iteration_bounds = array<i64: 1>, scalar_prefetch = 0 : i64, scratch_operands = 0 : i64, tpu.core_type = #tpu.core_type<tc>, window_params = [{transform_indices = @transform_0, window_bounds = array<i64: 16, 256>}, {pipeline_mode = #tpu.pipeline_mode<synchronous>, transform_indices = @transform_1, window_bounds = array<i64: 256, 256>}, {pipeline_mode = #tpu.pipeline_mode<synchronous>, transform_indices = @transform_2, window_bounds = array<i64: 1, 256>}, {pipeline_mode = #tpu.pipeline_mode<synchronous>, transform_indices = @transform_3, window_bounds = array<i64: 256, 256>}, {pipeline_mode = #tpu.pipeline_mode<synchronous>, transform_indices = @transform_4, window_bounds = array<i64: 1, 256>}, {pipeline_mode = #tpu.pipeline_mode<synchronous>, transform_indices = @transform_5, window_bounds = array<i64: 256, 128>}, {pipeline_mode = #tpu.pipeline_mode<synchronous>, transform_indices = @transform_6, window_bounds = array<i64: 1, 128>}, {transform_indices = @transform_7, window_bounds = array<i64: 16, 128>}]} {
    %c0 = arith.constant 0 : index
    %c0_0 = arith.constant 0 : index
    %0 = vector.load %arg1[%c0, %c0_0] : memref<16x256xf32, #tpu.memory_space<vmem>>, vector<16x256xf32>
    %1 = arith.truncf %0 : vector<16x256xf32> to vector<16x256xbf16>
    %c0_1 = arith.constant 0 : index
    %c0_2 = arith.constant 0 : index
    %2 = vector.load %arg2[%c0_1, %c0_2] : memref<256x256xbf16, #tpu.memory_space<vmem>>, vector<256x256xbf16>
    %cst = arith.constant dense<0.000000e+00> : vector<16x256xf32>
    %3 = tpu.matmul %1, %2, %cst {dimension_numbers = #tpu.dot_dimension_numbers<[1], [0], [0], [1], [0, 0, 1, 1], [], []>} : vector<16x256xbf16>, vector<256x256xbf16>, vector<16x256xf32> -> vector<16x256xf32>
    %c0_3 = arith.constant 0 : index
    %c0_4 = arith.constant 0 : index
    %4 = vector.load %arg3[%c0_3, %c0_4] : memref<1x256xf32, #tpu.memory_space<vmem>>, vector<1x256xf32>
    %5 = vector.broadcast %4 : vector<1x256xf32> to vector<16x256xf32>
    %6 = arith.addf %3, %5 : vector<16x256xf32>
    %cst_5 = arith.constant 0.000000e+00 : f32
    %7 = vector.broadcast %cst_5 : f32 to vector<16x256xf32>
    %8 = arith.maximumf %6, %7 : vector<16x256xf32>
    %9 = arith.truncf %8 : vector<16x256xf32> to vector<16x256xbf16>
    %c0_6 = arith.constant 0 : index
    %c0_7 = arith.constant 0 : index
    %10 = vector.load %arg4[%c0_6, %c0_7] : memref<256x256xbf16, #tpu.memory_space<vmem>>, vector<256x256xbf16>
    %cst_8 = arith.constant dense<0.000000e+00> : vector<16x256xf32>
    %11 = tpu.matmul %9, %10, %cst_8 {dimension_numbers = #tpu.dot_dimension_numbers<[1], [0], [0], [1], [0, 0, 1, 1], [], []>} : vector<16x256xbf16>, vector<256x256xbf16>, vector<16x256xf32> -> vector<16x256xf32>
    %c0_9 = arith.constant 0 : index
    %c0_10 = arith.constant 0 : index
    %12 = vector.load %arg5[%c0_9, %c0_10] : memref<1x256xf32, #tpu.memory_space<vmem>>, vector<1x256xf32>
    %13 = vector.broadcast %12 : vector<1x256xf32> to vector<16x256xf32>
    %14 = arith.addf %11, %13 : vector<16x256xf32>
    %cst_11 = arith.constant 0.000000e+00 : f32
    %15 = vector.broadcast %cst_11 : f32 to vector<16x256xf32>
    %16 = arith.maximumf %14, %15 : vector<16x256xf32>
    %17 = arith.truncf %16 : vector<16x256xf32> to vector<16x256xbf16>
    %c0_12 = arith.constant 0 : index
    %c0_13 = arith.constant 0 : index
    %18 = vector.load %arg6[%c0_12, %c0_13] : memref<256x128xbf16, #tpu.memory_space<vmem>>, vector<256x128xbf16>
    %cst_14 = arith.constant dense<0.000000e+00> : vector<16x128xf32>
    %19 = tpu.matmul %17, %18, %cst_14 {dimension_numbers = #tpu.dot_dimension_numbers<[1], [0], [0], [1], [0, 0, 1, 1], [], []>} : vector<16x256xbf16>, vector<256x128xbf16>, vector<16x128xf32> -> vector<16x128xf32>
    %c0_15 = arith.constant 0 : index
    %c0_16 = arith.constant 0 : index
    %20 = vector.load %arg7[%c0_15, %c0_16] : memref<1x128xf32, #tpu.memory_space<vmem>>, vector<1x128xf32>
    %21 = vector.broadcast %20 : vector<1x128xf32> to vector<16x128xf32>
    %22 = arith.addf %19, %21 : vector<16x128xf32>
    %cst_17 = arith.constant 0.000000e+00 : f32
    %23 = vector.broadcast %cst_17 : f32 to vector<16x128xf32>
    %24 = arith.maximumf %22, %23 : vector<16x128xf32>
    %c0_18 = arith.constant 0 : index
    %c0_19 = arith.constant 0 : index
    %25 = vector.load %arg8[%c0_18, %c0_19] : memref<16x128xf32, #tpu.memory_space<vmem>>, vector<16x128xf32>
    tpu.vector_store %arg8[%c0_18, %c0_19], %24 {strides = array<i32>} : memref<16x128xf32, #tpu.memory_space<vmem>>, vector<16x128xf32>,
    return
  }
  func.func @transform_0(%arg0: i32) -> (i32, i32) {
    %c0_i32 = arith.constant 0 : i32
    %c0_i32_0 = arith.constant 0 : i32
    return %arg0, %c0_i32 : i32, i32
  }
  func.func @transform_1(%arg0: i32) -> (i32, i32) {
    %c0_i32 = arith.constant 0 : i32
    %c0_i32_0 = arith.constant 0 : i32
    %c0_i32_1 = arith.constant 0 : i32
    return %c0_i32, %c0_i32_0 : i32, i32
  }
  func.func @transform_2(%arg0: i32) -> (i32, i32) {
    %c0_i32 = arith.constant 0 : i32
    %c0_i32_0 = arith.constant 0 : i32
    %c0_i32_1 = arith.constant 0 : i32
    return %c0_i32, %c0_i32_0 : i32, i32
  }
  func.func @transform_3(%arg0: i32) -> (i32, i32) {
    %c0_i32 = arith.constant 0 : i32
    %c0_i32_0 = arith.constant 0 : i32
    %c0_i32_1 = arith.constant 0 : i32
    return %c0_i32, %c0_i32_0 : i32, i32
  }
  func.func @transform_4(%arg0: i32) -> (i32, i32) {
    %c0_i32 = arith.constant 0 : i32
    %c0_i32_0 = arith.constant 0 : i32
    %c0_i32_1 = arith.constant 0 : i32
    return %c0_i32, %c0_i32_0 : i32, i32
  }
  func.func @transform_5(%arg0: i32) -> (i32, i32) {
    %c0_i32 = arith.constant 0 : i32
    %c0_i32_0 = arith.constant 0 : i32
    %c0_i32_1 = arith.constant 0 : i32
    return %c0_i32, %c0_i32_0 : i32, i32
  }
  func.func @transform_6(%arg0: i32) -> (i32, i32) {
    %c0_i32 = arith.constant 0 : i32
    %c0_i32_0 = arith.constant 0 : i32
    %c0_i32_1 = arith.constant 0 : i32
    return %c0_i32, %c0_i32_0 : i32, i32
  }
  func.func @transform_7(%arg0: i32) -> (i32, i32) {
    %c0_i32 = arith.constant 0 : i32
    %c0_i32_0 = arith.constant 0 : i32
    return %arg0, %c0_i32 : i32, i32
  }
}

</mosaic_0001>

<llo_original>
// kernel: dnn3_forward.1
$region0: #{dnn3_forward.1}
  #allocation0 [shape = 'u32[]', space=smem, size = 0x4, offset = 0x4, fixed_abs, tag = 'smem constant byte address 0x4 - core index']
  #allocation1 [shape = 'u32[144,128]{1,0:T(1,128)}', space=vmem, size = 0x12000, scoped, tag = 'internal scratch']
  %s0 = inlined_call_operand.hbm [shape: f32[16,256], index: 0, kind: input, shape index: {}]
  %s1 = inlined_call_operand.hbm [shape: bf16[256,256], index: 1, kind: input, shape index: {}]
  %s2 = inlined_call_operand.vmem [shape: f32[1,256], index: 2, kind: input, shape index: {}]
  %s3 = inlined_call_operand.hbm [shape: bf16[256,256], index: 3, kind: input, shape index: {}]
  %s4 = inlined_call_operand.vmem [shape: f32[1,256], index: 4, kind: input, shape index: {}]
  %s5 = inlined_call_operand.hbm [shape: bf16[256,128], index: 5, kind: input, shape index: {}]
  %s6 = inlined_call_operand.vmem [shape: f32[1,128], index: 6, kind: input, shape index: {}]
  %s7 = inlined_call_operand.hbm [shape: f32[16,128], index: 7, kind: output, shape index: {}]
  %s8 = sld [smem:[#allocation0]]
  $region54: #{dnn3_forward.1} parent=0
    _
  %s10 = ssub.s32 1, %s8
  %s11 = scalar_select 0, %s10, %s8
  $region1: #{dnn3_forward.1} parent=0
    #allocation2 [shape = 'u8[16384]{0}', space=vmem, size = 0x4000, scoped, tag = 'input window, operand 0, single buffered']
    #allocation3 [shape = 's32[1]{0}', space=sflag, size = 0x4, scoped, tag = 'scoped memory for dnn3_forward.1']
    #allocation4 [shape = 's32[1]{0}', space=sflag, size = 0x4, scoped, tag = 'scoped memory for dnn3_forward.1']
    #allocation5 [shape = 'u8[131072]{0}', space=vmem, size = 0x20000, scoped, tag = 'input window, operand 1, single buffered']
    #allocation6 [shape = 's32[1]{0}', space=sflag, size = 0x4, scoped, tag = 'scoped memory for dnn3_forward.1']
    #allocation7 [shape = 'u8[131072]{0}', space=vmem, size = 0x20000, scoped, tag = 'input window, operand 3, single buffered']
    #allocation8 [shape = 'u8[65536]{0}', space=vmem, size = 0x10000, scoped, tag = 'input window, operand 5, single buffered']
    #allocation9 [shape = 's32[1]{0}', space=sflag, size = 0x4, scoped, tag = 'scoped memory for dnn3_forward.1']
    #allocation10 [shape = 'u8[8192]{0}', space=vmem, size = 0x2000, scoped, tag = 'output window, operand 0, single buffered']
    %12 = vsyncpa [#allocation3], 0
    %13 = vsyncpa [#allocation6], 0
    %14 = vsyncpa [#allocation9], 0
    %15 = vsyncpa [#allocation4], 0
    // Predicated region
    $region2: #{dnn3_forward.1} parent=1 // pred_check
      _
    $region3: #{dnn3_forward.1} parent=1 // pred_check_branch
      %17 = sbr.rel (0) target = $region5
    $region4: #{dnn3_forward.1} parent=1 // pred_region
      %s19 = ssub.s32 512, 512
      %20 = vsyncadd [#allocation3], %s19
      %s21 = sshll.u32 [#allocation2], 4
      %s22 = int_to_ptr.vmem [resolvable:$true] %s21
      %27 = dma.hbm_to_vmem [thread:$0]  %s0, 512, %s22, [#allocation3], 256, 256, 16
    $region5: #{dnn3_forward.1} parent=1 // pred_fallthru
      _
    // Predicated region
    $region6: #{dnn3_forward.1} parent=1 // pred_check
      _
    $region7: #{dnn3_forward.1} parent=1 // pred_check_branch
      %29 = sbr.rel (0) target = $region9
    $region8: #{dnn3_forward.1} parent=1 // pred_region
      %s31 = ssub.s32 4096, 4096
      %32 = vsyncadd [#allocation6], %s31
      %s33 = sshll.u32 [#allocation5], 4
      %s34 = int_to_ptr.vmem [resolvable:$true] %s33
      %39 = dma.hbm_to_vmem [thread:$0]  %s1, 4096, %s34, [#allocation6], 128, 128, 8
    $region9: #{dnn3_forward.1} parent=1 // pred_fallthru
      _
    // Predicated region
    $region10: #{dnn3_forward.1} parent=1 // pred_check
      _
    $region11: #{dnn3_forward.1} parent=1 // pred_check_branch
      %41 = sbr.rel (0) target = $region13
    $region12: #{dnn3_forward.1} parent=1 // pred_region
      _
    $region13: #{dnn3_forward.1} parent=1 // pred_fallthru
      _
    // Predicated region
    $region14: #{dnn3_forward.1} parent=1 // pred_check
      _
    $region15: #{dnn3_forward.1} parent=1 // pred_check_branch
      %43 = sbr.rel (0) target = $region17
    $region16: #{dnn3_forward.1} parent=1 // pred_region
      %s45 = ssub.s32 4096, 4096
      %46 = vsyncadd [#allocation6], %s45
      %s47 = sshll.u32 [#allocation7], 4
      %s48 = int_to_ptr.vmem [resolvable:$true] %s47
      %53 = dma.hbm_to_vmem [thread:$0]  %s3, 4096, %s48, [#allocation6], 128, 128, 8
    $region17: #{dnn3_forward.1} parent=1 // pred_fallthru
      _
    // Predicated region
    $region18: #{dnn3_forward.1} parent=1 // pred_check
      _
    $region19: #{dnn3_forward.1} parent=1 // pred_check_branch
      %55 = sbr.rel (0) target = $region21
    $region20: #{dnn3_forward.1} parent=1 // pred_region
      _
    $region21: #{dnn3_forward.1} parent=1 // pred_fallthru
      _
    // Predicated region
    $region22: #{dnn3_forward.1} parent=1 // pred_check
      _
    $region23: #{dnn3_forward.1} parent=1 // pred_check_branch
      %57 = sbr.rel (0) target = $region25
    $region24: #{dnn3_forward.1} parent=1 // pred_region
      %s59 = ssub.s32 2048, 2048
      %60 = vsyncadd [#allocation9], %s59
      %s61 = sshll.u32 [#allocation8], 4
      %s62 = int_to_ptr.vmem [resolvable:$true] %s61
      %67 = dma.hbm_to_vmem [thread:$0]  %s5, 2048, %s62, [#allocation9], 64, 64, 4
    $region25: #{dnn3_forward.1} parent=1 // pred_fallthru
      _
    // Predicated region
    $region26: #{dnn3_forward.1} parent=1 // pred_check
      _
    $region27: #{dnn3_forward.1} parent=1 // pred_check_branch
      %69 = sbr.rel (0) target = $region29
    $region28: #{dnn3_forward.1} parent=1 // pred_region
      _
    $region29: #{dnn3_forward.1} parent=1 // pred_fallthru
      _
    // Predicated region
    $region30: #{dnn3_forward.1} parent=1 // pred_check
      _
    $region31: #{dnn3_forward.1} parent=1 // pred_check_branch
      %71 = sbr.rel (0) target = $region33
    $region32: #{dnn3_forward.1} parent=1 // pred_region
      %72 = dma.done [#allocation3], 512
    $region33: #{dnn3_forward.1} parent=1 // pred_fallthru
      _
    // Predicated region
    $region34: #{dnn3_forward.1} parent=1 // pred_check
      _
    $region35: #{dnn3_forward.1} parent=1 // pred_check_branch
      %74 = sbr.rel (0) target = $region37
    $region36: #{dnn3_forward.1} parent=1 // pred_region
      %75 = dma.done [#allocation6], 4096
    $region37: #{dnn3_forward.1} parent=1 // pred_fallthru
      _
    // Predicated region
    $region38: #{dnn3_forward.1} parent=1 // pred_check
      _
    $region39: #{dnn3_forward.1} parent=1 // pred_check_branch
      %77 = sbr.rel (0) target = $region41
    $region40: #{dnn3_forward.1} parent=1 // pred_region
      %78 = dma.done [#allocation6], 4096
    $region41: #{dnn3_forward.1} parent=1 // pred_fallthru
      _
    // Predicated region
    $region42: #{dnn3_forward.1} parent=1 // pred_check
      _
    $region43: #{dnn3_forward.1} parent=1 // pred_check_branch
      %80 = sbr.rel (0) target = $region45
    $region44: #{dnn3_forward.1} parent=1 // pred_region
      %81 = dma.done [#allocation9], 2048
    $region45: #{dnn3_forward.1} parent=1 // pred_fallthru
      _
    %v83 = vld [vmem:[#allocation2] sm:$0xff]
    %v84 = vld [vmem:[#allocation2 + $0x8] sm:$0xff]
    %v85 = vld [vmem:[#allocation2 + $0x10] sm:$0xff]
    %v86 = vld [vmem:[#allocation2 + $0x18] sm:$0xff]
    %v87 = vpack.c.bf16 %v85, %v83
    %v88 = vpack.c.bf16 %v86, %v84
    %v89 = vld [vmem:[#allocation5] sm:$0xff]
    %v90 = vld [vmem:[#allocation5 + $0x8] sm:$0xff]
    %v91 = vld [vmem:[#allocation5 + $0x10] sm:$0xff]
    %v92 = vld [vmem:[#allocation5 + $0x18] sm:$0xff]
    %v93 = vld [vmem:[#allocation5 + $0x20] sm:$0xff]
    %v94 = vld [vmem:[#allocation5 + $0x28] sm:$0xff]
    %v95 = vld [vmem:[#allocation5 + $0x30] sm:$0xff]
    %v96 = vld [vmem:[#allocation5 + $0x38] sm:$0xff]
    %v97 = vld [vmem:[#allocation5 + $0x40] sm:$0xff]
    %v98 = vld [vmem:[#allocation5 + $0x48] sm:$0xff]
    %v99 = vld [vmem:[#allocation5 + $0x50] sm:$0xff]
    %v100 = vld [vmem:[#allocation5 + $0x58] sm:$0xff]
    %v101 = vld [vmem:[#allocation5 + $0x60] sm:$0xff]
    %v102 = vld [vmem:[#allocation5 + $0x68] sm:$0xff]
    %v103 = vld [vmem:[#allocation5 + $0x70] sm:$0xff]
    %v104 = vld [vmem:[#allocation5 + $0x78] sm:$0xff]
    %v105 = vld [vmem:[#allocation5 + $0x80] sm:$0xff]
    %v106 = vld [vmem:[#allocation5 + $0x88] sm:$0xff]
    %v107 = vld [vmem:[#allocation5 + $0x90] sm:$0xff]
    %v108 = vld [vmem:[#allocation5 + $0x98] sm:$0xff]
    %v109 = vld [vmem:[#allocation5 + $0xa0] sm:$0xff]
    %v110 = vld [vmem:[#allocation5 + $0xa8] sm:$0xff]
    %v111 = vld [vmem:[#allocation5 + $0xb0] sm:$0xff]
    %v112 = vld [vmem:[#allocation5 + $0xb8] sm:$0xff]
    %v113 = vld [vmem:[#allocation5 + $0xc0] sm:$0xff]
    %v114 = vld [vmem:[#allocation5 + $0xc8] sm:$0xff]
    %v115 = vld [vmem:[#allocation5 + $0xd0] sm:$0xff]
    %v116 = vld [vmem:[#allocation5 + $0xd8] sm:$0xff]
    %v117 = vld [vmem:[#allocation5 + $0xe0] sm:$0xff]
    %v118 = vld [vmem:[#allocation5 + $0xe8] sm:$0xff]
    %v119 = vld [vmem:[#allocation5 + $0xf0] sm:$0xff]
    %v120 = vld [vmem:[#allocation5 + $0xf8] sm:$0xff]
    %v121 = vld [vmem:[%s2] sm:$0x3]
    %v123 = vlaneseq
    %v124 = vshrl.u32 %v123, 7
    %v125 = vsub.s32 0, %v124
    %v126 = vrot.slane %v121, %v125
    %v127 = vlaneseq
    %v128 = vshrl.u32 %v127, 7
    %v129 = vsub.s32 1, %v128
    %v130 = vrot.slane %v121, %v129
    %v165 = vunpack.c.l.b16 %v89
    %v166 = vunpack.c.h.b16 %v89
    %v167 = vunpack.c.l.b16 %v90
    %v168 = vunpack.c.h.b16 %v90
    %v169 = vunpack.c.l.b16 %v91
    %v170 = vunpack.c.h.b16 %v91
    %v171 = vunpack.c.l.b16 %v92
    %v172 = vunpack.c.h.b16 %v92
    %v173 = vunpack.c.l.b16 %v93
    %v174 = vunpack.c.h.b16 %v93
    %v175 = vunpack.c.l.b16 %v94
    %v176 = vunpack.c.h.b16 %v94
    %v177 = vunpack.c.l.b16 %v95
    %v178 = vunpack.c.h.b16 %v95
    %v179 = vunpack.c.l.b16 %v96
    %v180 = vunpack.c.h.b16 %v96
    %v181 = vunpack.c.l.b16 %v97
    %v182 = vunpack.c.h.b16 %v97
    %v183 = vunpack.c.l.b16 %v98
    %v184 = vunpack.c.h.b16 %v98
    %v185 = vunpack.c.l.b16 %v99
    %v186 = vunpack.c.h.b16 %v99
    %v187 = vunpack.c.l.b16 %v100
    %v188 = vunpack.c.h.b16 %v100
    %v189 = vunpack.c.l.b16 %v101
    %v190 = vunpack.c.h.b16 %v101
    %v191 = vunpack.c.l.b16 %v102
    %v192 = vunpack.c.h.b16 %v102
    %v193 = vunpack.c.l.b16 %v103
    %v194 = vunpack.c.h.b16 %v103
    %v195 = vunpack.c.l.b16 %v104
    %v196 = vunpack.c.h.b16 %v104
    %v197 = vunpack.c.l.b16 %v105
    %v198 = vunpack.c.h.b16 %v105
    %v199 = vunpack.c.l.b16 %v106
    %v200 = vunpack.c.h.b16 %v106
    %v201 = vunpack.c.l.b16 %v107
    %v202 = vunpack.c.h.b16 %v107
    %v203 = vunpack.c.l.b16 %v108
    %v204 = vunpack.c.h.b16 %v108
    %v205 = vunpack.c.l.b16 %v109
    %v206 = vunpack.c.h.b16 %v109
    %v207 = vunpack.c.l.b16 %v110
    %v208 = vunpack.c.h.b16 %v110
    %v209 = vunpack.c.l.b16 %v111
    %v210 = vunpack.c.h.b16 %v111
    %v211 = vunpack.c.l.b16 %v112
    %v212 = vunpack.c.h.b16 %v112
    %v213 = vunpack.c.l.b16 %v113
    %v214 = vunpack.c.h.b16 %v113
    %v215 = vunpack.c.l.b16 %v114
    %v216 = vunpack.c.h.b16 %v114
    %v217 = vunpack.c.l.b16 %v115
    %v218 = vunpack.c.h.b16 %v115
    %v219 = vunpack.c.l.b16 %v116
    %v220 = vunpack.c.h.b16 %v116
    %v221 = vunpack.c.l.b16 %v117
    %v222 = vunpack.c.h.b16 %v117
    %v223 = vunpack.c.l.b16 %v118
    %v224 = vunpack.c.h.b16 %v118
    %v225 = vunpack.c.l.b16 %v119
    %v226 = vunpack.c.h.b16 %v119
    %v227 = vunpack.c.l.b16 %v120
    %v228 = vunpack.c.h.b16 %v120
    %v229 = vpack.c.b16 %v167, %v165
    %v230 = vpack.c.b16 %v168, %v166
    %v231 = vpack.c.b16 %v171, %v169
    %v232 = vpack.c.b16 %v172, %v170
    %v233 = vpack.c.b16 %v175, %v173
    %v234 = vpack.c.b16 %v176, %v174
    %v235 = vpack.c.b16 %v179, %v177
    %v236 = vpack.c.b16 %v180, %v178
    %v237 = vpack.c.b16 %v183, %v181
    %v238 = vpack.c.b16 %v184, %v182
    %v239 = vpack.c.b16 %v187, %v185
    %v240 = vpack.c.b16 %v188, %v186
    %v241 = vpack.c.b16 %v191, %v189
    %v242 = vpack.c.b16 %v192, %v190
    %v243 = vpack.c.b16 %v195, %v193
    %v244 = vpack.c.b16 %v196, %v194
    %v245 = vpack.c.b16 %v199, %v197
    %v246 = vpack.c.b16 %v200, %v198
    %v247 = vpack.c.b16 %v203, %v201
    %v248 = vpack.c.b16 %v204, %v202
    %v249 = vpack.c.b16 %v207, %v205
    %v250 = vpack.c.b16 %v208, %v206
    %v251 = vpack.c.b16 %v211, %v209
    %v252 = vpack.c.b16 %v212, %v210
    %v253 = vpack.c.b16 %v215, %v213
    %v254 = vpack.c.b16 %v216, %v214
    %v255 = vpack.c.b16 %v219, %v217
    %v256 = vpack.c.b16 %v220, %v218
    %v257 = vpack.c.b16 %v223, %v221
    %v258 = vpack.c.b16 %v224, %v222
    %v259 = vpack.c.b16 %v227, %v225
    %v260 = vpack.c.b16 %v228, %v226
    %293 = vmatprep.subr.bf16.mxu0 %v244
    %294 = vmatpush1.bf16.msra.mxu0 %v243
    %295 = vmatprep.subr.bf16.mxu0 %v242
    %296 = vmatpush1.bf16.msra.mxu0 %v241
    %297 = vmatprep.subr.bf16.mxu0 %v240
    %298 = vmatpush1.bf16.msra.mxu0 %v239
    %299 = vmatprep.subr.bf16.mxu0 %v238
    %300 = vmatpush1.bf16.msra.mxu0 %v237
    %301 = vmatprep.subr.bf16.mxu0 %v236
    %302 = vmatpush1.bf16.msra.mxu0 %v235
    %303 = vmatprep.subr.bf16.mxu0 %v234
    %304 = vmatpush1.bf16.msra.mxu0 %v233
    %305 = vmatprep.subr.bf16.mxu0 %v232
    %306 = vmatpush1.bf16.msra.mxu0 %v231
    %307 = vmatprep.subr.bf16.mxu0 %v230
    %308 = vmatpush1.bf16.msra.mxu0 %v229
    %309 = vmatprep.subr.bf16.mxu0 %v260
    %310 = vmatpush2.bf16.msra.mxu0 %v259
    %311 = vmatprep.subr.bf16.mxu0 %v258
    %312 = vmatpush2.bf16.msra.mxu0 %v257
    %313 = vmatprep.subr.bf16.mxu0 %v256
    %314 = vmatpush2.bf16.msra.mxu0 %v255
    %315 = vmatprep.subr.bf16.mxu0 %v254
    %316 = vmatpush2.bf16.msra.mxu0 %v253
    %317 = vmatprep.subr.bf16.mxu0 %v252
    %318 = vmatpush2.bf16.msra.mxu0 %v251
    %319 = vmatprep.subr.bf16.mxu0 %v250
    %320 = vmatpush2.bf16.msra.mxu0 %v249
    %321 = vmatprep.subr.bf16.mxu0 %v248
    %322 = vmatpush2.bf16.msra.mxu0 %v247
    %323 = vmatprep.subr.bf16.mxu0 %v246
    %324 = vmatpush2.bf16.msra.mxu0 %v245
    %325 = vmatprep.mubr.bf16.mxu0 %v88
    %326 = vmatmul.mubr.bf16.gmra.mxu0 %v87
    %v327 = vpop.f32.mrf.mxu0
    %v328 = vadd.f32 %v126, %v327
    %v329 = vpop.f32.mrf.mxu0
    %v330 = vadd.f32 %v130, %v329
    %v331 = vpop.f32.mrf.mxu0
    %v332 = vadd.f32 %v126, %v331
    %v333 = vpop.f32.mrf.mxu0
    %v334 = vadd.f32 %v130, %v333
    %335 = vdwg.mxu0
    %v336 = vmax.f32 %v328, 0.0
    %v337 = vmax.f32 %v330, 0.0
    %v338 = vmax.f32 %v332, 0.0
    %v339 = vmax.f32 %v334, 0.0
    %v340 = vpack.c.bf16 %v338, %v336
    %v341 = vpack.c.bf16 %v339, %v337
    %v342 = vld [vmem:[#allocation7] sm:$0xff]
    %v343 = vld [vmem:[#allocation7 + $0x8] sm:$0xff]
    %v344 = vld [vmem:[#allocation7 + $0x10] sm:$0xff]
    %v345 = vld [vmem:[#allocation7 + $0x18] sm:$0xff]
    %v346 = vld [vmem:[#allocation7 + $0x20] sm:$0xff]
    %v347 = vld [vmem:[#allocation7 + $0x28] sm:$0xff]
    %v348 = vld [vmem:[#allocation7 + $0x30] sm:$0xff]
    %v349 = vld [vmem:[#allocation7 + $0x38] sm:$0xff]
    %v350 = vld [vmem:[#allocation7 + $0x40] sm:$0xff]
    %v351 = vld [vmem:[#allocation7 + $0x48] sm:$0xff]
    %v352 = vld [vmem:[#allocation7 + $0x50] sm:$0xff]
    %v353 = vld [vmem:[#allocation7 + $0x58] sm:$0xff]
    %v354 = vld [vmem:[#allocation7 + $0x60] sm:$0xff]
    %v355 = vld [vmem:[#allocation7 + $0x68] sm:$0xff]
    %v356 = vld [vmem:[#allocation7 + $0x70] sm:$0xff]
    %v357 = vld [vmem:[#allocation7 + $0x78] sm:$0xff]
    %v358 = vld [vmem:[#allocation7 + $0x80] sm:$0xff]
    %v359 = vld [vmem:[#allocation7 + $0x88] sm:$0xff]
    %v360 = vld [vmem:[#allocation7 + $0x90] sm:$0xff]
    %v361 = vld [vmem:[#allocation7 + $0x98] sm:$0xff]
    %v362 = vld [vmem:[#allocation7 + $0xa0] sm:$0xff]
    %v363 = vld [vmem:[#allocation7 + $0xa8] sm:$0xff]
    %v364 = vld [vmem:[#allocation7 + $0xb0] sm:$0xff]
    %v365 = vld [vmem:[#allocation7 + $0xb8] sm:$0xff]
    %v366 = vld [vmem:[#allocation7 + $0xc0] sm:$0xff]
    %v367 = vld [vmem:[#allocation7 + $0xc8] sm:$0xff]
    %v368 = vld [vmem:[#allocation7 + $0xd0] sm:$0xff]
    %v369 = vld [vmem:[#allocation7 + $0xd8] sm:$0xff]
    %v370 = vld [vmem:[#allocation7 + $0xe0] sm:$0xff]
    %v371 = vld [vmem:[#allocation7 + $0xe8] sm:$0xff]
    %v372 = vld [vmem:[#allocation7 + $0xf0] sm:$0xff]
    %v373 = vld [vmem:[#allocation7 + $0xf8] sm:$0xff]
    %v374 = vld [vmem:[%s4] sm:$0x3]
    %v376 = vlaneseq
    %v377 = vshrl.u32 %v376, 7
    %v378 = vsub.s32 0, %v377
    %v379 = vrot.slane %v374, %v378
    %v380 = vlaneseq
    %v381 = vshrl.u32 %v380, 7
    %v382 = vsub.s32 1, %v381
    %v383 = vrot.slane %v374, %v382
    %v418 = vunpack.c.l.b16 %v342
    %v419 = vunpack.c.h.b16 %v342
    %v420 = vunpack.c.l.b16 %v343
    %v421 = vunpack.c.h.b16 %v343
    %v422 = vunpack.c.l.b16 %v344
    %v423 = vunpack.c.h.b16 %v344
    %v424 = vunpack.c.l.b16 %v345
    %v425 = vunpack.c.h.b16 %v345
    %v426 = vunpack.c.l.b16 %v346
    %v427 = vunpack.c.h.b16 %v346
    %v428 = vunpack.c.l.b16 %v347
    %v429 = vunpack.c.h.b16 %v347
    %v430 = vunpack.c.l.b16 %v348
    %v431 = vunpack.c.h.b16 %v348
    %v432 = vunpack.c.l.b16 %v349
    %v433 = vunpack.c.h.b16 %v349
    %v434 = vunpack.c.l.b16 %v350
    %v435 = vunpack.c.h.b16 %v350
    %v436 = vunpack.c.l.b16 %v351
    %v437 = vunpack.c.h.b16 %v351
    %v438 = vunpack.c.l.b16 %v352
    %v439 = vunpack.c.h.b16 %v352
    %v440 = vunpack.c.l.b16 %v353
    %v441 = vunpack.c.h.b16 %v353
    %v442 = vunpack.c.l.b16 %v354
    %v443 = vunpack.c.h.b16 %v354
    %v444 = vunpack.c.l.b16 %v355
    %v445 = vunpack.c.h.b16 %v355
    %v446 = vunpack.c.l.b16 %v356
    %v447 = vunpack.c.h.b16 %v356
    %v448 = vunpack.c.l.b16 %v357
    %v449 = vunpack.c.h.b16 %v357
    %v450 = vunpack.c.l.b16 %v358
    %v451 = vunpack.c.h.b16 %v358
    %v452 = vunpack.c.l.b16 %v359
    %v453 = vunpack.c.h.b16 %v359
    %v454 = vunpack.c.l.b16 %v360
    %v455 = vunpack.c.h.b16 %v360
    %v456 = vunpack.c.l.b16 %v361
    %v457 = vunpack.c.h.b16 %v361
    %v458 = vunpack.c.l.b16 %v362
    %v459 = vunpack.c.h.b16 %v362
    %v460 = vunpack.c.l.b16 %v363
    %v461 = vunpack.c.h.b16 %v363
    %v462 = vunpack.c.l.b16 %v364
    %v463 = vunpack.c.h.b16 %v364
    %v464 = vunpack.c.l.b16 %v365
    %v465 = vunpack.c.h.b16 %v365
    %v466 = vunpack.c.l.b16 %v366
    %v467 = vunpack.c.h.b16 %v366
    %v468 = vunpack.c.l.b16 %v367
    %v469 = vunpack.c.h.b16 %v367
    %v470 = vunpack.c.l.b16 %v368
    %v471 = vunpack.c.h.b16 %v368
    %v472 = vunpack.c.l.b16 %v369
    %v473 = vunpack.c.h.b16 %v369
    %v474 = vunpack.c.l.b16 %v370
    %v475 = vunpack.c.h.b16 %v370
    %v476 = vunpack.c.l.b16 %v371
    %v477 = vunpack.c.h.b16 %v371
    %v478 = vunpack.c.l.b16 %v372
    %v479 = vunpack.c.h.b16 %v372
    %v480 = vunpack.c.l.b16 %v373
    %v481 = vunpack.c.h.b16 %v373
    %v482 = vpack.c.b16 %v420, %v418
    %v483 = vpack.c.b16 %v421, %v419
    %v484 = vpack.c.b16 %v424, %v422
    %v485 = vpack.c.b16 %v425, %v423
    %v486 = vpack.c.b16 %v428, %v426
    %v487 = vpack.c.b16 %v429, %v427
    %v488 = vpack.c.b16 %v432, %v430
    %v489 = vpack.c.b16 %v433, %v431
    %v490 = vpack.c.b16 %v436, %v434
    %v491 = vpack.c.b16 %v437, %v435
    %v492 = vpack.c.b16 %v440, %v438
    %v493 = vpack.c.b16 %v441, %v439
    %v494 = vpack.c.b16 %v444, %v442
    %v495 = vpack.c.b16 %v445, %v443
    %v496 = vpack.c.b16 %v448, %v446
    %v497 = vpack.c.b16 %v449, %v447
    %v498 = vpack.c.b16 %v452, %v450
    %v499 = vpack.c.b16 %v453, %v451
    %v500 = vpack.c.b16 %v456, %v454
    %v501 = vpack.c.b16 %v457, %v455
    %v502 = vpack.c.b16 %v460, %v458
    %v503 = vpack.c.b16 %v461, %v459
    %v504 = vpack.c.b16 %v464, %v462
    %v505 = vpack.c.b16 %v465, %v463
    %v506 = vpack.c.b16 %v468, %v466
    %v507 = vpack.c.b16 %v469, %v467
    %v508 = vpack.c.b16 %v472, %v470
    %v509 = vpack.c.b16 %v473, %v471
    %v510 = vpack.c.b16 %v476, %v474
    %v511 = vpack.c.b16 %v477, %v475
    %v512 = vpack.c.b16 %v480, %v478
    %v513 = vpack.c.b16 %v481, %v479
    %546 = vmatprep.subr.bf16.mxu0 %v497
    %547 = vmatpush1.bf16.msra.mxu0 %v496
    %548 = vmatprep.subr.bf16.mxu0 %v495
    %549 = vmatpush1.bf16.msra.mxu0 %v494
    %550 = vmatprep.subr.bf16.mxu0 %v493
    %551 = vmatpush1.bf16.msra.mxu0 %v492
    %552 = vmatprep.subr.bf16.mxu0 %v491
    %553 = vmatpush1.bf16.msra.mxu0 %v490
    %554 = vmatprep.subr.bf16.mxu0 %v489
    %555 = vmatpush1.bf16.msra.mxu0 %v488
    %556 = vmatprep.subr.bf16.mxu0 %v487
    %557 = vmatpush1.bf16.msra.mxu0 %v486
    %558 = vmatprep.subr.bf16.mxu0 %v485
    %559 = vmatpush1.bf16.msra.mxu0 %v484
    %560 = vmatprep.subr.bf16.mxu0 %v483
    %561 = vmatpush1.bf16.msra.mxu0 %v482
    %562 = vmatprep.subr.bf16.mxu0 %v513
    %563 = vmatpush2.bf16.msra.mxu0 %v512
    %564 = vmatprep.subr.bf16.mxu0 %v511
    %565 = vmatpush2.bf16.msra.mxu0 %v510
    %566 = vmatprep.subr.bf16.mxu0 %v509
    %567 = vmatpush2.bf16.msra.mxu0 %v508
    %568 = vmatprep.subr.bf16.mxu0 %v507
    %569 = vmatpush2.bf16.msra.mxu0 %v506
    %570 = vmatprep.subr.bf16.mxu0 %v505
    %571 = vmatpush2.bf16.msra.mxu0 %v504
    %572 = vmatprep.subr.bf16.mxu0 %v503
    %573 = vmatpush2.bf16.msra.mxu0 %v502
    %574 = vmatprep.subr.bf16.mxu0 %v501
    %575 = vmatpush2.bf16.msra.mxu0 %v500
    %576 = vmatprep.subr.bf16.mxu0 %v499
    %577 = vmatpush2.bf16.msra.mxu0 %v498
    %578 = vmatprep.mubr.bf16.mxu0 %v341
    %579 = vmatmul.mubr.bf16.gmra.mxu0 %v340
    %v580 = vpop.f32.mrf.mxu0
    %v581 = vadd.f32 %v379, %v580
    %v582 = vpop.f32.mrf.mxu0
    %v583 = vadd.f32 %v383, %v582
    %v584 = vpop.f32.mrf.mxu0
    %v585 = vadd.f32 %v379, %v584
    %v586 = vpop.f32.mrf.mxu0
    %v587 = vadd.f32 %v383, %v586
    %588 = vdwg.mxu0
    %v589 = vmax.f32 %v581, 0.0
    %v590 = vmax.f32 %v583, 0.0
    %v591 = vmax.f32 %v585, 0.0
    %v592 = vmax.f32 %v587, 0.0
    %v593 = vpack.c.bf16 %v591, %v589
    %v594 = vpack.c.bf16 %v592, %v590
    %v595 = vld [vmem:[#allocation8] sm:$0xf]
    %v596 = vld [vmem:[#allocation8 + $0x4] sm:$0xf]
    %v597 = vld [vmem:[#allocation8 + $0x8] sm:$0xf]
    %v598 = vld [vmem:[#allocation8 + $0xc] sm:$0xf]
    %v599 = vld [vmem:[#allocation8 + $0x10] sm:$0xf]
    %v600 = vld [vmem:[#allocation8 + $0x14] sm:$0xf]
    %v601 = vld [vmem:[#allocation8 + $0x18] sm:$0xf]
    %v602 = vld [vmem:[#allocation8 + $0x1c] sm:$0xf]
    %v603 = vld [vmem:[#allocation8 + $0x20] sm:$0xf]
    %v604 = vld [vmem:[#allocation8 + $0x24] sm:$0xf]
    %v605 = vld [vmem:[#allocation8 + $0x28] sm:$0xf]
    %v606 = vld [vmem:[#allocation8 + $0x2c] sm:$0xf]
    %v607 = vld [vmem:[#allocation8 + $0x30] sm:$0xf]
    %v608 = vld [vmem:[#allocation8 + $0x34] sm:$0xf]
    %v609 = vld [vmem:[#allocation8 + $0x38] sm:$0xf]
    %v610 = vld [vmem:[#allocation8 + $0x3c] sm:$0xf]
    %v611 = vld [vmem:[#allocation8 + $0x40] sm:$0xf]
    %v612 = vld [vmem:[#allocation8 + $0x44] sm:$0xf]
    %v613 = vld [vmem:[#allocation8 + $0x48] sm:$0xf]
    %v614 = vld [vmem:[#allocation8 + $0x4c] sm:$0xf]
    %v615 = vld [vmem:[#allocation8 + $0x50] sm:$0xf]
    %v616 = vld [vmem:[#allocation8 + $0x54] sm:$0xf]
    %v617 = vld [vmem:[#allocation8 + $0x58] sm:$0xf]
    %v618 = vld [vmem:[#allocation8 + $0x5c] sm:$0xf]
    %v619 = vld [vmem:[#allocation8 + $0x60] sm:$0xf]
    %v620 = vld [vmem:[#allocation8 + $0x64] sm:$0xf]
    %v621 = vld [vmem:[#allocation8 + $0x68] sm:$0xf]
    %v622 = vld [vmem:[#allocation8 + $0x6c] sm:$0xf]
    %v623 = vld [vmem:[#allocation8 + $0x70] sm:$0xf]
    %v624 = vld [vmem:[#allocation8 + $0x74] sm:$0xf]
    %v625 = vld [vmem:[#allocation8 + $0x78] sm:$0xf]
    %v626 = vld [vmem:[#allocation8 + $0x7c] sm:$0xf]
    %v627 = vld [vmem:[%s6] sm:$0x1]
    %v629 = vlaneseq
    %v630 = vshrl.u32 %v629, 7
    %v631 = vsub.s32 0, %v630
    %v632 = vrot.slane %v627, %v631
    %v666 = vunpack.c.l.b16 %v595
    %v667 = vunpack.c.l.b16 %v596
    %v668 = vunpack.c.l.b16 %v597
    %v669 = vunpack.c.l.b16 %v598
    %v670 = vunpack.c.l.b16 %v599
    %v671 = vunpack.c.l.b16 %v600
    %v672 = vunpack.c.l.b16 %v601
    %v673 = vunpack.c.l.b16 %v602
    %v674 = vunpack.c.l.b16 %v603
    %v675 = vunpack.c.l.b16 %v604
    %v676 = vunpack.c.l.b16 %v605
    %v677 = vunpack.c.l.b16 %v606
    %v678 = vunpack.c.l.b16 %v607
    %v679 = vunpack.c.l.b16 %v608
    %v680 = vunpack.c.l.b16 %v609
    %v681 = vunpack.c.l.b16 %v610
    %v682 = vunpack.c.l.b16 %v611
    %v683 = vunpack.c.l.b16 %v612
    %v684 = vunpack.c.l.b16 %v613
    %v685 = vunpack.c.l.b16 %v614
    %v686 = vunpack.c.l.b16 %v615
    %v687 = vunpack.c.l.b16 %v616
    %v688 = vunpack.c.l.b16 %v617
    %v689 = vunpack.c.l.b16 %v618
    %v690 = vunpack.c.l.b16 %v619
    %v691 = vunpack.c.l.b16 %v620
    %v692 = vunpack.c.l.b16 %v621
    %v693 = vunpack.c.l.b16 %v622
    %v694 = vunpack.c.l.b16 %v623
    %v695 = vunpack.c.l.b16 %v624
    %v696 = vunpack.c.l.b16 %v625
    %v697 = vunpack.c.l.b16 %v626
    %v698 = vpack.c.b16 %v667, %v666
    %v699 = vpack.c.b16 %v669, %v668
    %v700 = vpack.c.b16 %v671, %v670
    %v701 = vpack.c.b16 %v673, %v672
    %v702 = vpack.c.b16 %v675, %v674
    %v703 = vpack.c.b16 %v677, %v676
    %v704 = vpack.c.b16 %v679, %v678
    %v705 = vpack.c.b16 %v681, %v680
    %v706 = vpack.c.b16 %v683, %v682
    %v707 = vpack.c.b16 %v685, %v684
    %v708 = vpack.c.b16 %v687, %v686
    %v709 = vpack.c.b16 %v689, %v688
    %v710 = vpack.c.b16 %v691, %v690
    %v711 = vpack.c.b16 %v693, %v692
    %v712 = vpack.c.b16 %v695, %v694
    %v713 = vpack.c.b16 %v697, %v696
    %730 = vmatprep.subr.bf16.mxu0 0
    %731 = vmatpush1.bf16.msra.mxu0 %v705
    %732 = vmatprep.subr.bf16.mxu0 0
    %733 = vmatpush1.bf16.msra.mxu0 %v704
    %734 = vmatprep.subr.bf16.mxu0 0
    %735 = vmatpush1.bf16.msra.mxu0 %v703
    %736 = vmatprep.subr.bf16.mxu0 0
    %737 = vmatpush1.bf16.msra.mxu0 %v702
    %738 = vmatprep.subr.bf16.mxu0 0
    %739 = vmatpush1.bf16.msra.mxu0 %v701
    %740 = vmatprep.subr.bf16.mxu0 0
    %741 = vmatpush1.bf16.msra.mxu0 %v700
    %742 = vmatprep.subr.bf16.mxu0 0
    %743 = vmatpush1.bf16.msra.mxu0 %v699
    %744 = vmatprep.subr.bf16.mxu0 0
    %745 = vmatpush1.bf16.msra.mxu0 %v698
    %746 = vmatprep.subr.bf16.mxu0 0
    %747 = vmatpush2.bf16.msra.mxu0 %v713
    %748 = vmatprep.subr.bf16.mxu0 0
    %749 = vmatpush2.bf16.msra.mxu0 %v712
    %750 = vmatprep.subr.bf16.mxu0 0
    %751 = vmatpush2.bf16.msra.mxu0 %v711
    %752 = vmatprep.subr.bf16.mxu0 0
    %753 = vmatpush2.bf16.msra.mxu0 %v710
    %754 = vmatprep.subr.bf16.mxu0 0
    %755 = vmatpush2.bf16.msra.mxu0 %v709
    %756 = vmatprep.subr.bf16.mxu0 0
    %757 = vmatpush2.bf16.msra.mxu0 %v708
    %758 = vmatprep.subr.bf16.mxu0 0
    %759 = vmatpush2.bf16.msra.mxu0 %v707
    %760 = vmatprep.subr.bf16.mxu0 0
    %761 = vmatpush2.bf16.msra.mxu0 %v706
    %762 = vmatprep.mubr.bf16.mxu0 %v594
    %763 = vmatmul.mubr.bf16.gmra.mxu0 %v593
    %v764 = vpop.f32.mrf.mxu0
    %v765 = vadd.f32 %v632, %v764
    %v766 = vpop.f32.mrf.mxu0
    %v767 = vpop.f32.mrf.mxu0
    %v768 = vadd.f32 %v632, %v767
    %v769 = vpop.f32.mrf.mxu0
    %770 = vdwg.mxu0
    %v771 = vmax.f32 %v765, 0.0
    %v772 = vmax.f32 %v768, 0.0
    %773 = vst [vmem:[#allocation10] sm:$0xff] %v771
    %774 = vst [vmem:[#allocation10 + $0x8] sm:$0xff] %v772
    // Predicated region
    $region46: #{dnn3_forward.1} parent=1 // pred_check
      _
    $region47: #{dnn3_forward.1} parent=1 // pred_check_branch
      %776 = sbr.rel (0) target = $region49
    $region48: #{dnn3_forward.1} parent=1 // pred_region
      %s778 = ssub.s32 256, 256
      %779 = vsyncadd [#allocation4], %s778
      %s780 = sshll.u32 [#allocation10], 4
      %s781 = int_to_ptr.vmem [resolvable:$true] %s780
      %786 = dma.vmem_to_hbm [thread:$0]  %s781, 256, %s7, [#allocation4], 128, 128, 8
    $region49: #{dnn3_forward.1} parent=1 // pred_fallthru
      _
    // Predicated region
    $region50: #{dnn3_forward.1} parent=1 // pred_check
      _
    $region51: #{dnn3_forward.1} parent=1 // pred_check_branch
      %788 = sbr.rel (0) target = $region53
    $region52: #{dnn3_forward.1} parent=1 // pred_region
      %789 = dma.done [#allocation4], 256
    $region53: #{dnn3_forward.1} parent=1 // pred_fallthru
      _
    %790 = vsyncpa [#allocation3], 1
    %791 = vsyncpa [#allocation6], 1
    %792 = vsyncpa [#allocation9], 1
    %793 = vsyncpa [#allocation4], 1

</llo_original>
